<compile_context>
chip_gen: v7x
topology: tpu7x:2x2x1
jax: 0.10.0
libtpu: 0.0.40
codegen_flags: <defaults>
</compile_context>

<pallas_src>
import jax
import jax.numpy as jnp
from jax import lax
from jax.experimental import pallas as pl
from jax.experimental.pallas import tpu as pltpu


def _self_attn_pool_kernel(tok_ref, mask_ref, spans_ref, w_ref, out_ref):
    # tok_ref   : (Bt, L, H)  bf16 (streamed) or f32
    # mask_ref  : (Bt, 1, L)  i32   (1 = keep token)
    # spans_ref : (Bt, S, 2)  i32   ([..., 0] = left, [..., 1] = right, half-open)
    # w_ref     : (1, H)      f32   (nn.Linear(H, 1, bias=False).weight)
    # out_ref   : (Bt, S, H)  f32
    tok = tok_ref[...]                                           # (Bt, L, H)
    w_row = w_ref[...]                                           # (1, H) f32

    # z[b, t] = sum_h tok[b, t, h] * w[h] -- f32 VPU mul + lane reduce.
    z = jnp.sum(tok.astype(jnp.float32) * w_row, axis=-1)[:, None, :]   # (Bt, 1, L)

    # masked_fill(~constituent_mask, -inf)  (finite -1e30: exp underflows to 0)
    valid = mask_ref[...] != 0                                   # (Bt, 1, L)
    z = jnp.where(valid, z, jnp.float32(-1e30))

    # softmax over tokens (L, the lane axis).  For rows with >=1 valid token the
    # masked terms underflow to exactly 0; an all-masked row becomes uniform
    # (denom >= 1 always, so no NaN / no divide-by-zero).
    z_max = jnp.max(z, axis=-1, keepdims=True)                   # (Bt, 1, 1)
    e = jnp.exp(z - z_max)                                       # (Bt, 1, L)
    denom = jnp.sum(e, axis=-1, keepdims=True)                   # (Bt, 1, 1)
    a = e / denom                                                # exact; hidden under DMA

    # Span-gated weight matrix built directly in (Bt, S, L) orientation.
    L = tok.shape[1]
    spans = spans_ref[...]                                       # (Bt, S, 2)
    lefts = spans[:, :, 0:1]                                     # (Bt, S, 1)
    rights = spans[:, :, 1:2]                                    # (Bt, S, 1)
    pos = lax.broadcasted_iota(jnp.int32, (1, 1, L), 2)          # loop-invariant, tiny
    in_span = (pos >= lefts) & (pos < rights)                    # (Bt, S, L) via broadcast
    wmat = jnp.where(in_span, a, jnp.float32(0.0))               # (Bt, S, L) f32

    # Standard-orientation batched matmul (bf16 x bf16 -> f32 acc on the MXU).
    span_embs = jnp.einsum("bsl,blh->bsh", wmat.astype(tok.dtype), tok,
                           preferred_element_type=jnp.float32)   # (Bt, S, H) f32
    out_ref[...] = span_embs.astype(out_ref.dtype)


def _pick_vmem_limit_bytes():
    """Per-generation scoped-VMEM request (explicit, never the blind default)."""
    try:
        cap = getattr(pltpu.get_tpu_info(), "vmem_capacity_bytes", None)
    except Exception:
        cap = None
    if cap is not None and cap >= 100 * 1024 * 1024:
        return 96 * 1024 * 1024          # v5e / v6e: 128 MiB physical VMEM
    return 48 * 1024 * 1024              # v7x (64 MiB physical) and safe fallback


def self_attn_pool(token_embs, constituent_mask, spans, weight, *,
                   block_batch=None, stream_dtype=jnp.bfloat16):
    """token_embs (bs,L,H), constituent_mask (bs,L) i32/bool, spans (bs,S,2) i32,
    weight (1,H) f32 (nn.Linear(H,1,bias=False).weight)  ->  (bs*S, H) f32
    in torch.stack order (batch-major, then span order)."""
    bs, L, H = token_embs.shape
    S = spans.shape[1]

    # Stream token embeddings in bf16 (halves the dominant HBM read); math that
    # needs f32 (z reduce, softmax) is upcast inside the kernel.
    tok = token_embs.astype(stream_dtype)
    mask3 = constituent_mask.astype(jnp.int32).reshape(bs, 1, L)
    spans = spans.astype(jnp.int32)
    weight = weight.astype(jnp.float32).reshape(1, H)

    # Pad H to a multiple of 128 so the output block is lane-dense (zero pad in
    # tok/weight leaves z and the valid output columns unchanged).
    H_pad = pl.cdiv(H, 128) * 128
    if H_pad != H:
        tok = jnp.pad(tok, ((0, 0), (0, 0), (0, H_pad - H)))
        weight = jnp.pad(weight, ((0, 0), (0, H_pad - H)))

    tok_bytes = jnp.dtype(stream_dtype).itemsize
    vmem_limit = _pick_vmem_limit_bytes()

    if block_batch is None:
        # Per-batch-element VMEM footprint: double-buffered in/out blocks plus
        # in-kernel intermediates (f32 upcast, span gate, f32 matmul result).
        per_elem = (
            2 * (L * H_pad * tok_bytes      # tok block (x2 double-buffer)
                 + L * 4                    # mask block
                 + S * 2 * 4                # spans block
                 + S * H_pad * 4)           # f32 output block
            + L * H_pad * 4                 # f32 upcast of tok for the z reduce
            + 2 * S * L * 4                 # in_span + wmat
            + S * L * tok_bytes             # wmat cast for the matmul
            + S * H_pad * 4                 # f32 matmul result before store
            + 4 * L * 4                     # z / e / a rows
        )
        usable = int(0.75 * vmem_limit)     # headroom for compiler scratch
        block_batch = max(1, usable // max(per_elem, 1))
        # Keep >=2 grid steps per v7x TensorCore so the BlockSpec pipeline has
        # something to prefetch on each core.
        if bs >= 4:
            block_batch = min(block_batch, pl.cdiv(bs, 4))
        elif bs >= 2:
            block_batch = min(block_batch, pl.cdiv(bs, 2))
    Bt = int(max(1, min(block_batch, bs)))

    # Pad batch to a multiple of Bt (padded rows are dropped before returning).
    bs_pad = pl.cdiv(bs, Bt) * Bt
    if bs_pad != bs:
        pad = bs_pad - bs
        tok = jnp.pad(tok, ((0, pad), (0, 0), (0, 0)))
        mask3 = jnp.pad(mask3, ((0, pad), (0, 0), (0, 0)), constant_values=1)
        spans = jnp.pad(spans, ((0, pad), (0, 0), (0, 0)))

    grid = (bs_pad // Bt,)

    out = pl.pallas_call(
        _self_attn_pool_kernel,
        out_shape=jax.ShapeDtypeStruct((bs_pad, S, H_pad), jnp.float32),
        grid_spec=pltpu.PrefetchScalarGridSpec(
            num_scalar_prefetch=0,
            grid=grid,
            in_specs=[
                pl.BlockSpec((Bt, L, H_pad), lambda b: (b, 0, 0)),
                pl.BlockSpec((Bt, 1, L), lambda b: (b, 0, 0)),
                pl.BlockSpec((Bt, S, 2), lambda b: (b, 0, 0)),
                pl.BlockSpec((1, H_pad), lambda b: (0, 0)),
            ],
            out_specs=pl.BlockSpec((Bt, S, H_pad), lambda b: (b, 0, 0)),
        ),
        compiler_params=pltpu.CompilerParams(
            dimension_semantics=("parallel",),
            vmem_limit_bytes=vmem_limit),
    )(tok, mask3, spans, weight)

    # torch.stack order: batch-major, then span order within each batch element.
    return out[:bs, :, :H].reshape(bs * S, H)


def _reference(token_embs, constituent_mask, spans, weight):
    """Pure-JAX replica of the PyTorch forward (cfg.use_tg=True, tg_include_parens=False)."""
    z = jnp.einsum("blh,oh->bl", token_embs, weight)             # Linear(H->1, no bias)
    z = jnp.where(constituent_mask != 0, z, -jnp.inf)
    a = jax.nn.softmax(z, axis=1)
    bs, S, _ = spans.shape
    embs = []
    for b in range(bs):
        for s in range(S):
            left = int(spans[b, s, 0])
            right = int(spans[b, s, 1])
            t = token_embs[b, left:right]
            w = a[b, left:right]
            embs.append(w @ t)
    return jnp.stack(embs)


if __name__ == "__main__":
    bs, L, H, S = 8, 16, 128, 4

    key = jax.random.PRNGKey(0)
    k_tok, k_w = jax.random.split(key)

    token_embs = jax.random.normal(k_tok, (bs, L, H), dtype=jnp.float32)

    # nn.Linear(H, 1, bias=False).weight has shape (1, H).
    weight = jax.random.normal(k_w, (1, H), dtype=jnp.float32) * 0.1

    # constituent_mask: exclude "parens" at positions 0 and L-1 (1 = keep token).
    mask_bool = jnp.ones((bs, L), dtype=bool).at[:, 0].set(False).at[:, L - 1].set(False)
    constituent_mask = mask_bool.astype(jnp.int32)               # (bs, L)

    # Deterministic spans, half-open [left, right), same S per batch element.
    span_list = []
    for b in range(bs):
        row = []
        for s in range(S):
            left = (b + 2 * s) % (L - 2)
            right = min(L, left + 2 + ((b + s) % (L - left - 1)))
            row.append((left, right))
        span_list.append(row)
    spans = jnp.array(span_list, dtype=jnp.int32)                # (bs, S, 2)

    out = self_attn_pool(token_embs, constituent_mask, spans, weight)
    out = jax.block_until_ready(out)

    ref = _reference(token_embs, constituent_mask, spans, weight)
    assert out.shape == (bs * S, H), f"bad shape {out.shape}"
    # bf16 streaming of token_embs -> tolerance ~2e-2 vs the f32 reference.
    assert jnp.allclose(out, ref, rtol=2e-2, atol=2e-2), "mismatch vs reference"

    print("KERNEL_OK")
</pallas_src>

<mosaic_0001>
module attributes {stable_mosaic.version = 11 : i64} {
  func.func @_self_attn_pool_kernel(%arg0: i32, %arg1: memref<2x16x128xbf16, #tpu.memory_space<vmem>>, %arg2: memref<2x1x16xi32, #tpu.memory_space<vmem>>, %arg3: memref<2x4x2xi32, #tpu.memory_space<vmem>>, %arg4: memref<1x128xf32, #tpu.memory_space<vmem>>, %arg5: memref<2x4x128xf32, #tpu.memory_space<vmem>>) attributes {dimension_semantics = [#tpu.dimension_semantics<parallel>], iteration_bounds = array<i64: 4>, scalar_prefetch = 0 : i64, scratch_operands = 0 : i64, tpu.core_type = #tpu.core_type<tc>, window_params = [{transform_indices = @transform_0, window_bounds = array<i64: 2, 16, 128>}, {transform_indices = @transform_1, window_bounds = array<i64: 2, 1, 16>}, {transform_indices = @transform_2, window_bounds = array<i64: 2, 4, 2>}, {pipeline_mode = #tpu.pipeline_mode<synchronous>, transform_indices = @transform_3, window_bounds = array<i64: 1, 128>}, {transform_indices = @transform_4, window_bounds = array<i64: 2, 4, 128>}]} {
    %c0 = arith.constant 0 : index
    %c0_0 = arith.constant 0 : index
    %c0_1 = arith.constant 0 : index
    %0 = vector.load %arg1[%c0, %c0_0, %c0_1] : memref<2x16x128xbf16, #tpu.memory_space<vmem>>, vector<2x16x128xbf16>
    %c0_2 = arith.constant 0 : index
    %c0_3 = arith.constant 0 : index
    %1 = vector.load %arg4[%c0_2, %c0_3] : memref<1x128xf32, #tpu.memory_space<vmem>>, vector<1x128xf32>
    %2 = arith.extf %0 : vector<2x16x128xbf16> to vector<2x16x128xf32>
    %3 = vector.shape_cast %1 : vector<1x128xf32> to vector<1x1x128xf32>
    %4 = vector.broadcast %3 : vector<1x1x128xf32> to vector<2x16x128xf32>
    %5 = arith.mulf %2, %4 : vector<2x16x128xf32>
    %cst = arith.constant dense<0.000000e+00> : vector<2x16xf32>
    %6 = vector.multi_reduction <add>, %5, %cst [2] : vector<2x16x128xf32> to vector<2x16xf32>
    %7 = vector.shape_cast %6 : vector<2x16xf32> to vector<2x1x16xf32>
    %c0_4 = arith.constant 0 : index
    %c0_5 = arith.constant 0 : index
    %c0_6 = arith.constant 0 : index
    %8 = vector.load %arg2[%c0_4, %c0_5, %c0_6] : memref<2x1x16xi32, #tpu.memory_space<vmem>>, vector<2x1x16xi32>
    %c0_i32 = arith.constant 0 : i32
    %9 = vector.broadcast %c0_i32 : i32 to vector<2x1x16xi32>
    %10 = arith.cmpi ne, %8, %9 : vector<2x1x16xi32>
    %cst_7 = arith.constant -1.000000e+30 : f32
    %11 = vector.broadcast %cst_7 : f32 to vector<2x1x16xf32>
    %12 = arith.select %10, %7, %11 : vector<2x1x16xi1>, vector<2x1x16xf32>
    %cst_8 = arith.constant dense<0xFF800000> : vector<2x1xf32>
    %13 = vector.multi_reduction <maximumf>, %12, %cst_8 [2] : vector<2x1x16xf32> to vector<2x1xf32>
    %14 = vector.shape_cast %13 : vector<2x1xf32> to vector<2x1x1xf32>
    %15 = vector.broadcast %14 : vector<2x1x1xf32> to vector<2x1x16xf32>
    %16 = arith.subf %12, %15 : vector<2x1x16xf32>
    %17 = math.exp %16 : vector<2x1x16xf32>
    %cst_9 = arith.constant dense<0.000000e+00> : vector<2x1xf32>
    %18 = vector.multi_reduction <add>, %17, %cst_9 [2] : vector<2x1x16xf32> to vector<2x1xf32>
    %19 = vector.shape_cast %18 : vector<2x1xf32> to vector<2x1x1xf32>
    %20 = vector.broadcast %19 : vector<2x1x1xf32> to vector<2x1x16xf32>
    %21 = arith.divf %17, %20 : vector<2x1x16xf32>
    %c0_10 = arith.constant 0 : index
    %c0_11 = arith.constant 0 : index
    %c0_12 = arith.constant 0 : index
    %22 = vector.load %arg3[%c0_10, %c0_11, %c0_12] : memref<2x4x2xi32, #tpu.memory_space<vmem>>, vector<2x4x2xi32>
    %23 = vector.extract_strided_slice %22 {offsets = [0, 0, 0], sizes = [2, 4, 1], strides = [1, 1, 1]} : vector<2x4x2xi32> to vector<2x4x1xi32>
    %24 = vector.extract_strided_slice %22 {offsets = [0, 0, 1], sizes = [2, 4, 1], strides = [1, 1, 1]} : vector<2x4x2xi32> to vector<2x4x1xi32>
    %25 = tpu.iota {dimensions = array<i32: 2>} : vector<1x1x16xi32>
    %26 = vector.broadcast %25 : vector<1x1x16xi32> to vector<2x4x16xi32>
    %27 = vector.broadcast %23 : vector<2x4x1xi32> to vector<2x4x16xi32>
    %28 = arith.cmpi sge, %26, %27 : vector<2x4x16xi32>
    %29 = vector.broadcast %25 : vector<1x1x16xi32> to vector<2x4x16xi32>
    %30 = vector.broadcast %24 : vector<2x4x1xi32> to vector<2x4x16xi32>
    %31 = arith.cmpi slt, %29, %30 : vector<2x4x16xi32>
    %32 = arith.andi %28, %31 : vector<2x4x16xi1>
    %cst_13 = arith.constant 0.000000e+00 : f32
    %33 = vector.shape_cast %21 : vector<2x1x16xf32> to vector<2x1x16xf32>
    %34 = vector.broadcast %33 : vector<2x1x16xf32> to vector<2x4x16xf32>
    %35 = vector.broadcast %cst_13 : f32 to vector<2x4x16xf32>
    %36 = arith.select %32, %34, %35 : vector<2x4x16xi1>, vector<2x4x16xf32>
    %37 = arith.truncf %36 : vector<2x4x16xf32> to vector<2x4x16xbf16>
    "tpu.trace_start"() <{level = 10 : i32, message = "bsl,blh->bsh"}> : () -> ()
    %cst_14 = arith.constant dense<0.000000e+00> : vector<2x4x128xf32>
    %38 = tpu.matmul %37, %0, %cst_14 {dimension_numbers = #tpu.dot_dimension_numbers<[2], [1], [1], [2], [0, 0, 0, 1, 1, 2], [0], [0]>} : vector<2x4x16xbf16>, vector<2x16x128xbf16>, vector<2x4x128xf32> -> vector<2x4x128xf32>
    "tpu.trace_stop"() : () -> ()
    %c0_15 = arith.constant 0 : index
    %c0_16 = arith.constant 0 : index
    %c0_17 = arith.constant 0 : index
    %39 = vector.load %arg5[%c0_15, %c0_16, %c0_17] : memref<2x4x128xf32, #tpu.memory_space<vmem>>, vector<2x4x128xf32>
    tpu.vector_store %arg5[%c0_15, %c0_16, %c0_17], %38 {strides = array<i32>} : memref<2x4x128xf32, #tpu.memory_space<vmem>>, vector<2x4x128xf32>,
    return
  }
  func.func @transform_0(%arg0: i32) -> (i32, i32, i32) {
    %c0_i32 = arith.constant 0 : i32
    %c0_i32_0 = arith.constant 0 : i32
    %c0_i32_1 = arith.constant 0 : i32
    return %arg0, %c0_i32, %c0_i32_0 : i32, i32, i32
  }
  func.func @transform_1(%arg0: i32) -> (i32, i32, i32) {
    %c0_i32 = arith.constant 0 : i32
    %c0_i32_0 = arith.constant 0 : i32
    %c0_i32_1 = arith.constant 0 : i32
    return %arg0, %c0_i32, %c0_i32_0 : i32, i32, i32
  }
  func.func @transform_2(%arg0: i32) -> (i32, i32, i32) {
    %c0_i32 = arith.constant 0 : i32
    %c0_i32_0 = arith.constant 0 : i32
    %c0_i32_1 = arith.constant 0 : i32
    return %arg0, %c0_i32, %c0_i32_0 : i32, i32, i32
  }
  func.func @transform_3(%arg0: i32) -> (i32, i32) {
    %c0_i32 = arith.constant 0 : i32
    %c0_i32_0 = arith.constant 0 : i32
    %c0_i32_1 = arith.constant 0 : i32
    return %c0_i32, %c0_i32_0 : i32, i32
  }
  func.func @transform_4(%arg0: i32) -> (i32, i32, i32) {
    %c0_i32 = arith.constant 0 : i32
    %c0_i32_0 = arith.constant 0 : i32
    %c0_i32_1 = arith.constant 0 : i32
    return %arg0, %c0_i32, %c0_i32_0 : i32, i32, i32
  }
}

</mosaic_0001>

<llo_original>
// kernel: tpu_custom_call.1
$region0: #{tpu_custom_call.1}
  #allocation0 [shape = 'u32[]', space=smem, size = 0x4, offset = 0x4, fixed_abs, tag = 'smem constant byte address 0x4 - core index']
  #allocation1 [shape = 'u32[144,128]{1,0:T(1,128)}', space=vmem, size = 0x12000, scoped, tag = 'internal scratch']
  %s0 = inlined_call_operand.hbm [shape: bf16[8,16,128], index: 0, kind: input, shape index: {}]
  %s1 = inlined_call_operand.vmem [shape: s32[8,1,16], index: 1, kind: input, shape index: {}]
  %s2 = inlined_call_operand.vmem [shape: s32[8,4,2], index: 2, kind: input, shape index: {}]
  %s3 = inlined_call_operand.vmem [shape: f32[1,128], index: 3, kind: input, shape index: {}]
  %s4 = inlined_call_operand.hbm [shape: f32[8,4,128], index: 4, kind: output, shape index: {}]
  %s5 = sld [smem:[#allocation0]]
  $region53: #{tpu_custom_call.1} parent=0
    _
  %s7 = ssub.s32 1, %s5
  %s8 = scalar_select 0, %s7, %s5
  $region1: #{tpu_custom_call.1} parent=0
    #allocation2 [shape = 'u8[16384]{0}', space=vmem, size = 0x4000, scoped, tag = 'input window, operand 0']
    #allocation3 [shape = 's32[2]{0}', space=sflag, size = 0x8, scoped, tag = 'scoped memory for tpu_custom_call.1']
    #allocation4 [shape = 's32[2]{0}', space=sflag, size = 0x8, scoped, tag = 'scoped memory for tpu_custom_call.1']
    #allocation5 [shape = 'u8[8192]{0}', space=vmem, size = 0x2000, scoped, tag = 'output window, operand 0']
    %9 = vsyncpa [#allocation3], 0
    %s10 = scalar_lea.sflag [#allocation3], 1
    %11 = vsyncpa %s10, 0
    %12 = vsyncpa [#allocation4], 0
    %s13 = scalar_lea.sflag [#allocation4], 1
    %14 = vsyncpa %s13, 0
    loop: start=0, step=1, limit=6
    $region2: #{tpu_custom_call.1} parent=1 // loop_pre_header
      _
    $region3: #{tpu_custom_call.1} parent=1 // loop_header
      %s16 = sphi 0, %s20
      %p17 = scmp.ge.s32.totalorder %s16, 6
      %s26 = sphi 0, %s28
      %s29 = sphi 0, %s26
      %s30 = sphi 0, %s29
      %s46 = sphi 0, %s30
      %s52 = sphi 0, %s54
      %s55 = sphi 0, %s52
      %s56 = sphi 0, %s55
      %s72 = sphi 0, %s56
      %s78 = sphi 0, %s80
      %s81 = sphi 0, %s78
      %s82 = sphi 0, %s81
      %s98 = sphi 0, %s82
      %s102 = sphi 0, %s102
      %s104 = sphi 0, %s102
      %s105 = sphi 0, %s104
      %s119 = sphi 0, %s105
      %s125 = sphi 0, %s127
      %s128 = sphi 0, %s125
      %s129 = sphi 0, %s128
      %s145 = sphi 0, %s129
    $region4: #{tpu_custom_call.1} parent=1 // loop_header_branch
      %19 = sbr.rel (%p17) target = $region8
    $region5: #{tpu_custom_call.1} parent=1 // loop_body
      %s21 = ssub.s32 %s16, 1
      %s22 = ssub.s32 %s16, 2
      %s23 = sadd.s32 %s16, 1
      %s24 = ssub.s32 %s16, %s23
      %p25 = scmp.eq.s32.totalorder %s24, 0
      %s27 = sadd.s32 %s26, 1
      %s28 = scalar_select %p25, %s26, %s27
      %p31 = pneg %p25
      %p32 = scmp.eq.s32.totalorder %s16, 3
      %p33 = por %p31, %p32
      %p34 = scmp.ne.s32.totalorder %s26, %s29
      %p35 = scmp.eq.s32.totalorder %s16, 0
      %p36 = por %p34, %p35
      %p37 = scmp.ne.s32.totalorder %s26, %s29
      %p38 = scmp.eq.s32.totalorder %s21, 3
      %p39 = por %p37, %p38
      %p40 = scmp.ne.s32.totalorder %s29, %s30
      %p41 = scmp.eq.s32.totalorder %s21, 0
      %p42 = por %p40, %p41
      %p43 = scmp.ne.s32.totalorder %s29, %s30
      %p44 = scmp.eq.s32.totalorder %s22, 3
      %p45 = por %p43, %p44
      %p47 = scmp.ne.s32.totalorder %s30, %s46
      %p48 = scmp.eq.s32.totalorder %s22, 0
      %p49 = por %p47, %p48
      %s50 = ssub.s32 %s16, %s23
      %p51 = scmp.eq.s32.totalorder %s50, 0
      %s53 = sadd.s32 %s52, 1
      %s54 = scalar_select %p51, %s52, %s53
      %p57 = pneg %p51
      %p58 = scmp.eq.s32.totalorder %s16, 3
      %p59 = por %p57, %p58
      %p60 = scmp.ne.s32.totalorder %s52, %s55
      %p61 = scmp.eq.s32.totalorder %s16, 0
      %p62 = por %p60, %p61
      %p63 = scmp.ne.s32.totalorder %s52, %s55
      %p64 = scmp.eq.s32.totalorder %s21, 3
      %p65 = por %p63, %p64
      %p66 = scmp.ne.s32.totalorder %s55, %s56
      %p67 = scmp.eq.s32.totalorder %s21, 0
      %p68 = por %p66, %p67
      %p69 = scmp.ne.s32.totalorder %s55, %s56
      %p70 = scmp.eq.s32.totalorder %s22, 3
      %p71 = por %p69, %p70
      %p73 = scmp.ne.s32.totalorder %s56, %s72
      %p74 = scmp.eq.s32.totalorder %s22, 0
      %p75 = por %p73, %p74
      %s76 = ssub.s32 %s16, %s23
      %p77 = scmp.eq.s32.totalorder %s76, 0
      %s79 = sadd.s32 %s78, 1
      %s80 = scalar_select %p77, %s78, %s79
      %p83 = pneg %p77
      %p84 = scmp.eq.s32.totalorder %s16, 3
      %p85 = por %p83, %p84
      %p86 = scmp.ne.s32.totalorder %s78, %s81
      %p87 = scmp.eq.s32.totalorder %s16, 0
      %p88 = por %p86, %p87
      %p89 = scmp.ne.s32.totalorder %s78, %s81
      %p90 = scmp.eq.s32.totalorder %s21, 3
      %p91 = por %p89, %p90
      %p92 = scmp.ne.s32.totalorder %s81, %s82
      %p93 = scmp.eq.s32.totalorder %s21, 0
      %p94 = por %p92, %p93
      %p95 = scmp.ne.s32.totalorder %s81, %s82
      %p96 = scmp.eq.s32.totalorder %s22, 3
      %p97 = por %p95, %p96
      %p99 = scmp.ne.s32.totalorder %s82, %s98
      %p100 = scmp.eq.s32.totalorder %s22, 0
      %p101 = por %p99, %p100
      %s103 = sadd.s32 %s102, 1
      %p106 = scmp.eq.s32.totalorder %s16, 3
      %p107 = scmp.ne.s32.totalorder %s102, %s104
      %p108 = scmp.eq.s32.totalorder %s16, 0
      %p109 = por %p107, %p108
      %p110 = scmp.ne.s32.totalorder %s102, %s104
      %p111 = scmp.eq.s32.totalorder %s21, 3
      %p112 = por %p110, %p111
      %p113 = scmp.ne.s32.totalorder %s104, %s105
      %p114 = scmp.eq.s32.totalorder %s21, 0
      %p115 = por %p113, %p114
      %p116 = scmp.ne.s32.totalorder %s104, %s105
      %p117 = scmp.eq.s32.totalorder %s22, 3
      %p118 = por %p116, %p117
      %p120 = scmp.ne.s32.totalorder %s105, %s119
      %p121 = scmp.eq.s32.totalorder %s22, 0
      %p122 = por %p120, %p121
      %s123 = ssub.s32 %s16, %s23
      %p124 = scmp.eq.s32.totalorder %s123, 0
      %s126 = sadd.s32 %s125, 1
      %s127 = scalar_select %p124, %s125, %s126
      %p130 = pneg %p124
      %p131 = scmp.eq.s32.totalorder %s16, 3
      %p132 = por %p130, %p131
      %p133 = scmp.ne.s32.totalorder %s125, %s128
      %p134 = scmp.eq.s32.totalorder %s16, 0
      %p135 = por %p133, %p134
      %p136 = scmp.ne.s32.totalorder %s125, %s128
      %p137 = scmp.eq.s32.totalorder %s21, 3
      %p138 = por %p136, %p137
      %p139 = scmp.ne.s32.totalorder %s128, %s129
      %p140 = scmp.eq.s32.totalorder %s21, 0
      %p141 = por %p139, %p140
      %p142 = scmp.ne.s32.totalorder %s128, %s129
      %p143 = scmp.eq.s32.totalorder %s22, 3
      %p144 = por %p142, %p143
      %p146 = scmp.ne.s32.totalorder %s129, %s145
      %p147 = scmp.eq.s32.totalorder %s22, 0
      %p148 = por %p146, %p147
      %p149 = scmp.le.s32.totalorder 1, %s16
      %p150 = scmp.lt.s32.totalorder %s16, 5
      %p151 = pnand %p149, %p150
      %p152 = pneg %p151
      // Predicated region
      $region9: #{tpu_custom_call.1} parent=5 // pred_check
        _
      $region10: #{tpu_custom_call.1} parent=5 // pred_check_branch
        %154 = sbr.rel (%p151) target = $region12
      $region11: #{tpu_custom_call.1} parent=5 // pred_region
        %s155 = ssub.s32 %s16, 1
        // Predicated region
        $region13: #{tpu_custom_call.1} parent=11 // pred_check
          %p156 = pneg %p115
        $region14: #{tpu_custom_call.1} parent=11 // pred_check_branch
          %158 = sbr.rel (%p156) target = $region16
        $region15: #{tpu_custom_call.1} parent=11 // pred_region
          _
        $region16: #{tpu_custom_call.1} parent=11 // pred_fallthru
          _
      $region12: #{tpu_custom_call.1} parent=5 // pred_fallthru
        _
      %p159 = scmp.lt.s32.totalorder %s16, 4
      // Predicated region
      $region17: #{tpu_custom_call.1} parent=5 // pred_check
        %p160 = pneg %p159
      $region18: #{tpu_custom_call.1} parent=5 // pred_check_branch
        %162 = sbr.rel (%p160) target = $region20
      $region19: #{tpu_custom_call.1} parent=5 // pred_region
        // Predicated region
        $region21: #{tpu_custom_call.1} parent=19 // pred_check
          %p163 = pneg %p36
        $region22: #{tpu_custom_call.1} parent=19 // pred_check_branch
          %165 = sbr.rel (%p163) target = $region24
        $region23: #{tpu_custom_call.1} parent=19 // pred_region
          %s166 = sand.u32 %s26, 1
          %s167 = scalar_lea.sflag [#allocation3], %s166
          %s168 = sand.u32 %s26, 1
          %s169 = smul.addr %s168, 16
          %s170 = scalar_lea.vmem [#allocation2], %s169
          %s171 = smul.u32 2, %s16
          %s173 = ssub.s32 256, 256
          %174 = vsyncadd %s167, %s173
          %s175 = smul.addr %s171, 2
          %s176 = smul.addr %s175, 64
          %s177 = scalar_lea.hbm %s0, %s176
          %s178 = sshll.u32 %s170, 4
          %s179 = int_to_ptr.vmem [resolvable:$true] %s178
          %184 = dma.hbm_to_vmem [thread:$0]  %s177, 256, %s179, %s167, 64, 64, 4
        $region24: #{tpu_custom_call.1} parent=19 // pred_fallthru
          _
        // Predicated region
        $region25: #{tpu_custom_call.1} parent=19 // pred_check
          %p185 = pneg %p62
        $region26: #{tpu_custom_call.1} parent=19 // pred_check_branch
          %187 = sbr.rel (%p185) target = $region28
        $region27: #{tpu_custom_call.1} parent=19 // pred_region
          %s188 = smul.u32 2, %s16
          %p189 = scmp.lt.s32.totalorder %s188, 7
          %s190 = scalar_select %p189, %s188, 7
          %s191 = scalar_lea.vmem %s1, %s190
          %s192 = smul.u32 2, %s16
        $region28: #{tpu_custom_call.1} parent=19 // pred_fallthru
          _
        // Predicated region
        $region29: #{tpu_custom_call.1} parent=19 // pred_check
          %p193 = pneg %p88
        $region30: #{tpu_custom_call.1} parent=19 // pred_check_branch
          %195 = sbr.rel (%p193) target = $region32
        $region31: #{tpu_custom_call.1} parent=19 // pred_region
          %s196 = smul.u32 2, %s16
          %p197 = scmp.lt.s32.totalorder %s196, 7
          %s198 = scalar_select %p197, %s196, 7
          %s199 = smul.addr %s198, 4
          %s200 = scalar_lea.vmem %s2, %s199
          %s201 = smul.u32 2, %s16
        $region32: #{tpu_custom_call.1} parent=19 // pred_fallthru
          _
      $region20: #{tpu_custom_call.1} parent=5 // pred_fallthru
        _
      %p202 = scmp.le.s32.totalorder 1, %s16
      %p203 = scmp.lt.s32.totalorder %s16, 5
      %p204 = pnand %p202, %p203
      %p205 = pneg %p204
      // Predicated region
      $region33: #{tpu_custom_call.1} parent=5 // pred_check
        _
      $region34: #{tpu_custom_call.1} parent=5 // pred_check_branch
        %207 = sbr.rel (%p204) target = $region36
      $region35: #{tpu_custom_call.1} parent=5 // pred_region
        %s208 = ssub.s32 %s16, 1
        %s209 = sand.u32 %s29, 1
        %s210 = scalar_lea.sflag [#allocation3], %s209
        %s211 = sand.u32 %s29, 1
        %s212 = smul.addr %s211, 16
        %s213 = scalar_lea.vmem [#allocation2], %s212
        // Predicated region
        $region37: #{tpu_custom_call.1} parent=35 // pred_check
          %p214 = pneg %p42
        $region38: #{tpu_custom_call.1} parent=35 // pred_check_branch
          %216 = sbr.rel (%p214) target = $region40
        $region39: #{tpu_custom_call.1} parent=35 // pred_region
          %217 = dma.done %s210, 256
        $region40: #{tpu_custom_call.1} parent=35 // pred_fallthru
          _
        %s218 = sand.u32 %s29, 1
        %s219 = scalar_lea.sflag [#allocation3], %s218
        %s220 = sand.u32 %s29, 1
        %s221 = smul.addr %s220, 16
        %s222 = scalar_lea.vmem [#allocation2], %s221
        %p223 = pneg %p42
        %p224 = pneg %p39
        %s225 = smul.u32 2, %s21
        %p226 = scmp.lt.s32.totalorder %s225, 7
        %s227 = scalar_select %p226, %s225, 7
        %s228 = scalar_lea.vmem %s1, %s227
        %p229 = pneg %p68
        %p230 = pneg %p65
        %s231 = smul.u32 2, %s21
        %p232 = scmp.lt.s32.totalorder %s231, 7
        %s233 = scalar_select %p232, %s231, 7
        %s234 = smul.addr %s233, 4
        %s235 = scalar_lea.vmem %s2, %s234
        %p236 = pneg %p94
        %p237 = pneg %p91
        %p238 = pneg %p115
        %p239 = pneg %p112
        %p240 = pneg %p141
        %p241 = pneg %p138
        %s242 = sand.u32 %s128, 1
        %s243 = scalar_lea.sflag [#allocation4], %s242
        %s244 = sand.u32 %s128, 1
        %s245 = smul.addr %s244, 8
        %s246 = scalar_lea.vmem [#allocation5], %s245
        %s247 = smul.u32 2, %s21
        %s248 = smul.u32 2, %s21
        %p249 = scmp.lt.s32.totalorder %s248, 7
        %s250 = scalar_select %p249, %s248, 7
        %s251 = scalar_lea.vmem %s1, %s250
        %s252 = smul.u32 2, %s21
        %s253 = smul.u32 2, %s21
        %p254 = scmp.lt.s32.totalorder %s253, 7
        %s255 = scalar_select %p254, %s253, 7
        %s256 = smul.addr %s255, 4
        %s257 = scalar_lea.vmem %s2, %s256
        %s258 = smul.u32 2, %s21
        %s259 = smul.u32 2, %s21
        %v261 = vld [vmem:[%s213] sm:$0xf]
        %v262 = vld [vmem:[%s213 + $0x4] sm:$0xf]
        %v263 = vld [vmem:[%s213 + $0x8] sm:$0xf]
        %v264 = vld [vmem:[%s213 + $0xc] sm:$0xf]
        %v265 = vld [vmem:[%s3] sm:$0x1]
        %v266 = vunpack.c.l.bf16 %v261
        %v267 = vunpack.c.l.bf16 %v262
        %v268 = vunpack.c.l.bf16 %v263
        %v269 = vunpack.c.l.bf16 %v264
        %v271 = vlaneseq
        %v272 = vshrl.u32 %v271, 7
        %v273 = vsub.s32 0, %v272
        %v274 = vrot.slane %v265, %v273
        %v276 = vmul.f32 %v266, %v274
        %v277 = vmul.f32 %v267, %v274
        %v278 = vmul.f32 %v268, %v274
        %v279 = vmul.f32 %v269, %v274
        %280 = vadd.xlane.f32.xlu0 %v276
        %v281 = vpop.xlane.xlu0 %280
        %282 = vadd.xlane.f32.xlu0 %v277
        %v283 = vpop.xlane.xlu0 %282
        %284 = vadd.xlane.f32.xlu0 %v278
        %v285 = vpop.xlane.xlu0 %284
        %286 = vadd.xlane.f32.xlu0 %v279
        %v287 = vpop.xlane.xlu0 %286
        %v288 = vld [vmem:[%s251] sm:$0x1]
        %v289 = vld [vmem:[%s251 + $0x1] sm:$0x1]
        %vm290 = vcmp.ne.s32.totalorder %v288, 0
        %vm291 = vcmp.ne.s32.totalorder %v289, 0
        %v296 = vlaneseq
        %v297 = vshrl.u32 %v296, 7
        %v298 = vsub.s32 0, %v297
        %v299 = vrot.slane %v281, %v298
        %v300 = vlaneseq
        %v301 = vshrl.u32 %v300, 7
        %v302 = vsub.s32 1, %v301
        %v303 = vrot.slane %v281, %v302
        %v304 = vlaneseq
        %v305 = vshrl.u32 %v304, 7
        %v306 = vsub.s32 2, %v305
        %v307 = vrot.slane %v281, %v306
        %v308 = vlaneseq
        %v309 = vshrl.u32 %v308, 7
        %v310 = vsub.s32 3, %v309
        %v311 = vrot.slane %v281, %v310
        %v312 = vlaneseq
        %v313 = vshrl.u32 %v312, 7
        %v314 = vsub.s32 4, %v313
        %v315 = vrot.slane %v281, %v314
        %v316 = vlaneseq
        %v317 = vshrl.u32 %v316, 7
        %v318 = vsub.s32 5, %v317
        %v319 = vrot.slane %v281, %v318
        %v320 = vlaneseq
        %v321 = vshrl.u32 %v320, 7
        %v322 = vsub.s32 6, %v321
        %v323 = vrot.slane %v281, %v322
        %v324 = vlaneseq
        %v325 = vshrl.u32 %v324, 7
        %v326 = vsub.s32 7, %v325
        %v327 = vrot.slane %v281, %v326
        %v328 = vlaneseq
        %v329 = vshrl.u32 %v328, 7
        %v330 = vsub.s32 0, %v329
        %v331 = vrot.slane %v283, %v330
        %v332 = vlaneseq
        %v333 = vshrl.u32 %v332, 7
        %v334 = vsub.s32 1, %v333
        %v335 = vrot.slane %v283, %v334
        %v336 = vlaneseq
        %v337 = vshrl.u32 %v336, 7
        %v338 = vsub.s32 2, %v337
        %v339 = vrot.slane %v283, %v338
        %v340 = vlaneseq
        %v341 = vshrl.u32 %v340, 7
        %v342 = vsub.s32 3, %v341
        %v343 = vrot.slane %v283, %v342
        %v344 = vlaneseq
        %v345 = vshrl.u32 %v344, 7
        %v346 = vsub.s32 4, %v345
        %v347 = vrot.slane %v283, %v346
        %v348 = vlaneseq
        %v349 = vshrl.u32 %v348, 7
        %v350 = vsub.s32 5, %v349
        %v351 = vrot.slane %v283, %v350
        %v352 = vlaneseq
        %v353 = vshrl.u32 %v352, 7
        %v354 = vsub.s32 6, %v353
        %v355 = vrot.slane %v283, %v354
        %v356 = vlaneseq
        %v357 = vshrl.u32 %v356, 7
        %v358 = vsub.s32 7, %v357
        %v359 = vrot.slane %v283, %v358
        %v360 = vlaneseq
        %v361 = vshrl.u32 %v360, 7
        %v362 = vsub.s32 0, %v361
        %v363 = vrot.slane %v285, %v362
        %v364 = vlaneseq
        %v365 = vshrl.u32 %v364, 7
        %v366 = vsub.s32 1, %v365
        %v367 = vrot.slane %v285, %v366
        %v368 = vlaneseq
        %v369 = vshrl.u32 %v368, 7
        %v370 = vsub.s32 2, %v369
        %v371 = vrot.slane %v285, %v370
        %v372 = vlaneseq
        %v373 = vshrl.u32 %v372, 7
        %v374 = vsub.s32 3, %v373
        %v375 = vrot.slane %v285, %v374
        %v376 = vlaneseq
        %v377 = vshrl.u32 %v376, 7
        %v378 = vsub.s32 4, %v377
        %v379 = vrot.slane %v285, %v378
        %v380 = vlaneseq
        %v381 = vshrl.u32 %v380, 7
        %v382 = vsub.s32 5, %v381
        %v383 = vrot.slane %v285, %v382
        %v384 = vlaneseq
        %v385 = vshrl.u32 %v384, 7
        %v386 = vsub.s32 6, %v385
        %v387 = vrot.slane %v285, %v386
        %v388 = vlaneseq
        %v389 = vshrl.u32 %v388, 7
        %v390 = vsub.s32 7, %v389
        %v391 = vrot.slane %v285, %v390
        %v392 = vlaneseq
        %v393 = vshrl.u32 %v392, 7
        %v394 = vsub.s32 0, %v393
        %v395 = vrot.slane %v287, %v394
        %v396 = vlaneseq
        %v397 = vshrl.u32 %v396, 7
        %v398 = vsub.s32 1, %v397
        %v399 = vrot.slane %v287, %v398
        %v400 = vlaneseq
        %v401 = vshrl.u32 %v400, 7
        %v402 = vsub.s32 2, %v401
        %v403 = vrot.slane %v287, %v402
        %v404 = vlaneseq
        %v405 = vshrl.u32 %v404, 7
        %v406 = vsub.s32 3, %v405
        %v407 = vrot.slane %v287, %v406
        %v408 = vlaneseq
        %v409 = vshrl.u32 %v408, 7
        %v410 = vsub.s32 4, %v409
        %v411 = vrot.slane %v287, %v410
        %v412 = vlaneseq
        %v413 = vshrl.u32 %v412, 7
        %v414 = vsub.s32 5, %v413
        %v415 = vrot.slane %v287, %v414
        %v416 = vlaneseq
        %v417 = vshrl.u32 %v416, 7
        %v418 = vsub.s32 6, %v417
        %v419 = vrot.slane %v287, %v418
        %v420 = vlaneseq
        %v421 = vshrl.u32 %v420, 7
        %v422 = vsub.s32 7, %v421
        %v423 = vrot.slane %v287, %v422
        %v424 = vcombine.low %v299, %v303
        %v425 = vcombine.low %v307, %v311
        %v426 = vcombine.low %v315, %v319
        %v427 = vcombine.low %v323, %v327
        %v429 = vunpack.c.l.s4 1966171168
        %v430 = vunpack.c.0.s8 %v429
        %v431 = vlaneseq
        %v432 = vshrl.u32 %v431, 7
        %v433 = vsub.s32 %v430, %v432
        %v434 = vrot.slane %v424, %v433
        %v436 = vunpack.c.l.s4 1966171168
        %v437 = vunpack.c.0.s8 %v436
        %v438 = vlaneseq
        %v439 = vshrl.u32 %v438, 7
        %v440 = vsub.s32 %v437, %v439
        %v441 = vrot.slane %v425, %v440
        %v443 = vunpack.c.l.s4 1966171168
        %v444 = vunpack.c.0.s8 %v443
        %v445 = vlaneseq
        %v446 = vshrl.u32 %v445, 7
        %v447 = vsub.s32 %v444, %v446
        %v448 = vrot.slane %v426, %v447
        %v450 = vunpack.c.l.s4 1966171168
        %v451 = vunpack.c.0.s8 %v450
        %v452 = vlaneseq
        %v453 = vshrl.u32 %v452, 7
        %v454 = vsub.s32 %v451, %v453
        %v455 = vrot.slane %v427, %v454
        %v456 = vcombine.low %v434, %v441
        %v457 = vcombine.low %v448, %v455
        %v459 = vunpack.c.l.s4 1966171168
        %v460 = vunpack.c.0.s8 %v459
        %v461 = vlaneseq
        %v462 = vshrl.u32 %v461, 7
        %v463 = vsub.s32 %v460, %v462
        %v464 = vrot.slane %v456, %v463
        %v466 = vunpack.c.l.s4 1966171168
        %v467 = vunpack.c.0.s8 %v466
        %v468 = vlaneseq
        %v469 = vshrl.u32 %v468, 7
        %v470 = vsub.s32 %v467, %v469
        %v471 = vrot.slane %v457, %v470
        %v472 = vcombine.low %v464, %v471
        %v473 = vcombine.low %v331, %v335
        %v474 = vcombine.low %v339, %v343
        %v475 = vcombine.low %v347, %v351
        %v476 = vcombine.low %v355, %v359
        %v478 = vunpack.c.l.s4 1966171168
        %v479 = vunpack.c.0.s8 %v478
        %v480 = vlaneseq
        %v481 = vshrl.u32 %v480, 7
        %v482 = vsub.s32 %v479, %v481
        %v483 = vrot.slane %v473, %v482
        %v485 = vunpack.c.l.s4 1966171168
        %v486 = vunpack.c.0.s8 %v485
        %v487 = vlaneseq
        %v488 = vshrl.u32 %v487, 7
        %v489 = vsub.s32 %v486, %v488
        %v490 = vrot.slane %v474, %v489
        %v492 = vunpack.c.l.s4 1966171168
        %v493 = vunpack.c.0.s8 %v492
        %v494 = vlaneseq
        %v495 = vshrl.u32 %v494, 7
        %v496 = vsub.s32 %v493, %v495
        %v497 = vrot.slane %v475, %v496
        %v499 = vunpack.c.l.s4 1966171168
        %v500 = vunpack.c.0.s8 %v499
        %v501 = vlaneseq
        %v502 = vshrl.u32 %v501, 7
        %v503 = vsub.s32 %v500, %v502
        %v504 = vrot.slane %v476, %v503
        %v505 = vcombine.low %v483, %v490
        %v506 = vcombine.low %v497, %v504
        %v508 = vunpack.c.l.s4 1966171168
        %v509 = vunpack.c.0.s8 %v508
        %v510 = vlaneseq
        %v511 = vshrl.u32 %v510, 7
        %v512 = vsub.s32 %v509, %v511
        %v513 = vrot.slane %v505, %v512
        %v515 = vunpack.c.l.s4 1966171168
        %v516 = vunpack.c.0.s8 %v515
        %v517 = vlaneseq
        %v518 = vshrl.u32 %v517, 7
        %v519 = vsub.s32 %v516, %v518
        %v520 = vrot.slane %v506, %v519
        %v521 = vcombine.low %v513, %v520
        %v522 = vcombine.low %v363, %v367
        %v523 = vcombine.low %v371, %v375
        %v524 = vcombine.low %v379, %v383
        %v525 = vcombine.low %v387, %v391
        %v527 = vunpack.c.l.s4 1966171168
        %v528 = vunpack.c.0.s8 %v527
        %v529 = vlaneseq
        %v530 = vshrl.u32 %v529, 7
        %v531 = vsub.s32 %v528, %v530
        %v532 = vrot.slane %v522, %v531
        %v534 = vunpack.c.l.s4 1966171168
        %v535 = vunpack.c.0.s8 %v534
        %v536 = vlaneseq
        %v537 = vshrl.u32 %v536, 7
        %v538 = vsub.s32 %v535, %v537
        %v539 = vrot.slane %v523, %v538
        %v541 = vunpack.c.l.s4 1966171168
        %v542 = vunpack.c.0.s8 %v541
        %v543 = vlaneseq
        %v544 = vshrl.u32 %v543, 7
        %v545 = vsub.s32 %v542, %v544
        %v546 = vrot.slane %v524, %v545
        %v548 = vunpack.c.l.s4 1966171168
        %v549 = vunpack.c.0.s8 %v548
        %v550 = vlaneseq
        %v551 = vshrl.u32 %v550, 7
        %v552 = vsub.s32 %v549, %v551
        %v553 = vrot.slane %v525, %v552
        %v554 = vcombine.low %v532, %v539
        %v555 = vcombine.low %v546, %v553
        %v557 = vunpack.c.l.s4 1966171168
        %v558 = vunpack.c.0.s8 %v557
        %v559 = vlaneseq
        %v560 = vshrl.u32 %v559, 7
        %v561 = vsub.s32 %v558, %v560
        %v562 = vrot.slane %v554, %v561
        %v564 = vunpack.c.l.s4 1966171168
        %v565 = vunpack.c.0.s8 %v564
        %v566 = vlaneseq
        %v567 = vshrl.u32 %v566, 7
        %v568 = vsub.s32 %v565, %v567
        %v569 = vrot.slane %v555, %v568
        %v570 = vcombine.low %v562, %v569
        %v571 = vcombine.low %v395, %v399
        %v572 = vcombine.low %v403, %v407
        %v573 = vcombine.low %v411, %v415
        %v574 = vcombine.low %v419, %v423
        %v576 = vunpack.c.l.s4 1966171168
        %v577 = vunpack.c.0.s8 %v576
        %v578 = vlaneseq
        %v579 = vshrl.u32 %v578, 7
        %v580 = vsub.s32 %v577, %v579
        %v581 = vrot.slane %v571, %v580
        %v583 = vunpack.c.l.s4 1966171168
        %v584 = vunpack.c.0.s8 %v583
        %v585 = vlaneseq
        %v586 = vshrl.u32 %v585, 7
        %v587 = vsub.s32 %v584, %v586
        %v588 = vrot.slane %v572, %v587
        %v590 = vunpack.c.l.s4 1966171168
        %v591 = vunpack.c.0.s8 %v590
        %v592 = vlaneseq
        %v593 = vshrl.u32 %v592, 7
        %v594 = vsub.s32 %v591, %v593
        %v595 = vrot.slane %v573, %v594
        %v597 = vunpack.c.l.s4 1966171168
        %v598 = vunpack.c.0.s8 %v597
        %v599 = vlaneseq
        %v600 = vshrl.u32 %v599, 7
        %v601 = vsub.s32 %v598, %v600
        %v602 = vrot.slane %v574, %v601
        %v603 = vcombine.low %v581, %v588
        %v604 = vcombine.low %v595, %v602
        %v606 = vunpack.c.l.s4 1966171168
        %v607 = vunpack.c.0.s8 %v606
        %v608 = vlaneseq
        %v609 = vshrl.u32 %v608, 7
        %v610 = vsub.s32 %v607, %v609
        %v611 = vrot.slane %v603, %v610
        %v613 = vunpack.c.l.s4 1966171168
        %v614 = vunpack.c.0.s8 %v613
        %v615 = vlaneseq
        %v616 = vshrl.u32 %v615, 7
        %v617 = vsub.s32 %v614, %v616
        %v618 = vrot.slane %v604, %v617
        %v619 = vcombine.low %v611, %v618
        %620 = vset.pattern.permute.xlu0 0
        %621 = vperm.xlu0 %620, %v472
        %v622 = vpop.permute.xlu0 %621
        %623 = vset.pattern.permute.xlu0 0
        %624 = vperm.xlu0 %623, %v521
        %v625 = vpop.permute.xlu0 %624
        %626 = vset.pattern.permute.xlu0 0
        %627 = vperm.xlu0 %626, %v570
        %v628 = vpop.permute.xlu0 %627
        %629 = vset.pattern.permute.xlu0 0
        %630 = vperm.xlu0 %629, %v619
        %v631 = vpop.permute.xlu0 %630
        %v632 = vlaneseq
        %v633 = vand.u32 %v632, 127
        %v634 = vlaneseq
        %v635 = vshrl.u32 %v634, 7
        %v636 = vsub.s32 %v633, %v635
        %v637 = vrot.slane %v622, %v636
        %v638 = vadd.s32 %v633, 4294967288
        %v639 = vlaneseq
        %v640 = vshrl.u32 %v639, 7
        %v641 = vsub.s32 %v638, %v640
        %v642 = vrot.slane %v625, %v641
        %vm643 = vcmask 130112
        %v644 = vsel %vm643, %v642, %v637
        %v645 = vlaneseq
        %v646 = vshrl.u32 %v645, 7
        %v647 = vsub.s32 %v633, %v646
        %v648 = vrot.slane %v628, %v647
        %v649 = vlaneseq
        %v650 = vshrl.u32 %v649, 7
        %v651 = vsub.s32 %v638, %v650
        %v652 = vrot.slane %v631, %v651
        %v653 = vsel %vm643, %v652, %v648
        %v655 = vunpack.c.l.s4 1966171168
        %v656 = vunpack.c.0.s8 %v655
        %v657 = vlaneseq
        %v658 = vshrl.u32 %v657, 7
        %v659 = vsub.s32 %v656, %v658
        %v660 = vrot.slane %v644, %v659
        %v662 = vunpack.c.l.s4 1966171168
        %v663 = vunpack.c.0.s8 %v662
        %v664 = vlaneseq
        %v665 = vshrl.u32 %v664, 7
        %v666 = vsub.s32 %v663, %v665
        %v667 = vrot.slane %v660, %v666
        %v669 = vunpack.c.l.s4 1966171168
        %v670 = vunpack.c.0.s8 %v669
        %v671 = vlaneseq
        %v672 = vshrl.u32 %v671, 7
        %v673 = vsub.s32 %v670, %v672
        %v674 = vrot.slane %v653, %v673
        %v676 = vunpack.c.l.s4 1966171168
        %v677 = vunpack.c.0.s8 %v676
        %v678 = vlaneseq
        %v679 = vshrl.u32 %v678, 7
        %v680 = vsub.s32 %v677, %v679
        %v681 = vrot.slane %v674, %v680
        %v684 = vsel %vm290, %v667, -1e+30
        %v685 = vsel %vm291, %v681, -1e+30
        %vm686 = vcmask 122880
        %v687 = vsel %vm686, %v684, -inf
        %688 = vmax.xlane.f32.xlu0 %v687
        %v689 = vpop.xlane.xlu0 %688
        %v690 = vsel %vm686, %v685, -inf
        %691 = vmax.xlane.f32.xlu0 %v690
        %v692 = vpop.xlane.xlu0 %691
        %v693 = vsub.f32 %v684, %v689
        %v694 = vsub.f32 %v685, %v692
        %v695 = vmul.f32 %v693, 1.442695
        %v696 = vpow.pop %v695
        %v697 = vmul.f32 %v694, 1.442695
        %v698 = vpow.pop %v697
        %v699 = vsel %vm686, %v696, 0.0
        %700 = vadd.xlane.f32.xlu0 %v699
        %v701 = vpop.xlane.xlu0 %700
        %v702 = vsel %vm686, %v698, 0.0
        %703 = vadd.xlane.f32.xlu0 %v702
        %v704 = vpop.xlane.xlu0 %703
        %v705 = vrcp.pop %v701
        %v706 = vmul.f32 %v696, %v705
        %v707 = vrcp.pop %v704
        %v708 = vmul.f32 %v698, %v707
        %v709 = vld [vmem:[%s257] sm:$0xf]
        %v710 = vld [vmem:[%s257 + $0x4] sm:$0xf]
        %711 = vset.pattern.permute.xlu0 0
        %712 = vperm.xlu0 %711, %v709
        %v713 = vpop.permute.xlu0 %712
        %714 = vset.pattern.permute.xlu0 0
        %715 = vperm.xlu0 %714, %v710
        %v716 = vpop.permute.xlu0 %715
        %vm717 = vcmp.ge.s32.totalorder %v633, %v713
        %vm718 = vcmp.ge.s32.totalorder %v633, %v716
        %719 = vset.pattern.permute.xlu0 1
        %720 = vperm.xlu0 %719, %v709
        %v721 = vpop.permute.xlu0 %720
        %722 = vset.pattern.permute.xlu0 1
        %723 = vperm.xlu0 %722, %v710
        %v724 = vpop.permute.xlu0 %723
        %vm725 = vcmp.lt.s32.totalorder %v633, %v721
        %vm726 = vcmp.lt.s32.totalorder %v633, %v724
        %vm727 = vmand %vm717, %vm725
        %vm728 = vmand %vm718, %vm726
        %v731 = vlaneseq
        %v732 = vshrl.u32 %v731, 7
        %v733 = vsub.s32 0, %v732
        %v734 = vrot.slane %v706, %v733
        %v735 = vlaneseq
        %v736 = vshrl.u32 %v735, 7
        %v737 = vsub.s32 0, %v736
        %v738 = vrot.slane %v708, %v737
        %v741 = vsel %vm727, %v734, 0.0
        %v742 = vsel %vm728, %v738, 0.0
        %v743 = vpack.c.bf16 %v741, %v741
        %v744 = vpack.c.bf16 %v742, %v742
        %v747 = vunpack.c.l.b16 %v261
        %v748 = vunpack.c.l.b16 %v262
        %v749 = vpack.c.b16 %v748, %v747
        %vm751 = vcmask 130048
        %v753 = vsel %vm751, %v743, 0
        %755 = vmatprep.subr.bf16.mxu0 0
        %756 = vmatpush1.bf16.msra.mxu0 %v749
        %757 = vmatprep.subr.bf16.mxu0 0
        %758 = vmatpush1.bf16.msra.mxu0 0
        %759 = vmatprep.subr.bf16.mxu0 0
        %760 = vmatpush1.bf16.msra.mxu0 0
        %761 = vmatprep.subr.bf16.mxu0 0
        %762 = vmatpush1.bf16.msra.mxu0 0
        %763 = vmatprep.subr.bf16.mxu0 0
        %764 = vmatpush1.bf16.msra.mxu0 0
        %765 = vmatprep.subr.bf16.mxu0 0
        %766 = vmatpush1.bf16.msra.mxu0 0
        %767 = vmatprep.subr.bf16.mxu0 0
        %768 = vmatpush1.bf16.msra.mxu0 0
        %769 = vmatprep.subr.bf16.mxu0 0
        %770 = vmatpush1.bf16.msra.mxu0 0
        %771 = vmatprep.subr.bf16.mxu0 0
        %772 = vmatpush1.bf16.msra.mxu0 0
        %773 = vmatprep.subr.bf16.mxu0 0
        %774 = vmatpush1.bf16.msra.mxu0 0
        %775 = vmatprep.subr.bf16.mxu0 0
        %776 = vmatpush1.bf16.msra.mxu0 0
        %777 = vmatprep.subr.bf16.mxu0 0
        %778 = vmatpush1.bf16.msra.mxu0 0
        %779 = vmatprep.subr.bf16.mxu0 0
        %780 = vmatpush1.bf16.msra.mxu0 0
        %781 = vmatprep.subr.bf16.mxu0 0
        %782 = vmatpush1.bf16.msra.mxu0 0
        %783 = vmatprep.subr.bf16.mxu0 0
        %784 = vmatpush1.bf16.msra.mxu0 0
        %785 = vmatprep.subr.bf16.mxu0 0
        %786 = vmatpush1.bf16.msra.mxu0 0
        %787 = vmatprep.mubr.bf16.mxu0 0
        %788 = vmatmul.mubr.bf16.gmra.mrb[0].mxu0 %v753
        %v789 = vpop.f32.mrb[0].mxu0
        %v790 = vadd.f32 0.0, %v789
        %v791 = vpop.f32.mrb[0].mxu0
        %v792 = vpop.f32.mrb[0].mxu0
        %v793 = vpop.f32.mrb[0].mxu0
        %794 = vdwg.mxu0
        %v797 = vunpack.c.l.b16 %v263
        %v798 = vunpack.c.l.b16 %v264
        %v799 = vpack.c.b16 %v798, %v797
        %v802 = vsel %vm751, %v744, 0
        %804 = vmatprep.subr.bf16.mxu0 0
        %805 = vmatpush1.bf16.msra.mxu0 %v799
        %806 = vmatprep.subr.bf16.mxu0 0
        %807 = vmatpush1.bf16.msra.mxu0 0
        %808 = vmatprep.subr.bf16.mxu0 0
        %809 = vmatpush1.bf16.msra.mxu0 0
        %810 = vmatprep.subr.bf16.mxu0 0
        %811 = vmatpush1.bf16.msra.mxu0 0
        %812 = vmatprep.subr.bf16.mxu0 0
        %813 = vmatpush1.bf16.msra.mxu0 0
        %814 = vmatprep.subr.bf16.mxu0 0
        %815 = vmatpush1.bf16.msra.mxu0 0
        %816 = vmatprep.subr.bf16.mxu0 0
        %817 = vmatpush1.bf16.msra.mxu0 0
        %818 = vmatprep.subr.bf16.mxu0 0
        %819 = vmatpush1.bf16.msra.mxu0 0
        %820 = vmatprep.subr.bf16.mxu0 0
        %821 = vmatpush1.bf16.msra.mxu0 0
        %822 = vmatprep.subr.bf16.mxu0 0
        %823 = vmatpush1.bf16.msra.mxu0 0
        %824 = vmatprep.subr.bf16.mxu0 0
        %825 = vmatpush1.bf16.msra.mxu0 0
        %826 = vmatprep.subr.bf16.mxu0 0
        %827 = vmatpush1.bf16.msra.mxu0 0
        %828 = vmatprep.subr.bf16.mxu0 0
        %829 = vmatpush1.bf16.msra.mxu0 0
        %830 = vmatprep.subr.bf16.mxu0 0
        %831 = vmatpush1.bf16.msra.mxu0 0
        %832 = vmatprep.subr.bf16.mxu0 0
        %833 = vmatpush1.bf16.msra.mxu0 0
        %834 = vmatprep.subr.bf16.mxu0 0
        %835 = vmatpush1.bf16.msra.mxu0 0
        %836 = vmatprep.mubr.bf16.mxu0 0
        %837 = vmatmul.mubr.bf16.gmra.mrb[0].mxu0 %v802
        %v838 = vpop.f32.mrb[0].mxu0
        %v839 = vadd.f32 0.0, %v838
        %v840 = vpop.f32.mrb[0].mxu0
        %v841 = vpop.f32.mrb[0].mxu0
        %v842 = vpop.f32.mrb[0].mxu0
        %843 = vdwg.mxu0
        %844 = vst [vmem:[%s246] sm:$0xf] %v790
        %845 = vst [vmem:[%s246 + $0x4] sm:$0xf] %v839
        %s846 = sand.u32 %s128, 1
        %s847 = scalar_lea.sflag [#allocation4], %s846
        %s848 = sand.u32 %s128, 1
        %s849 = smul.addr %s848, 8
        %s850 = scalar_lea.vmem [#allocation5], %s849
        // Predicated region
        $region41: #{tpu_custom_call.1} parent=35 // pred_check
          %p851 = pneg %p138
        $region42: #{tpu_custom_call.1} parent=35 // pred_check_branch
          %853 = sbr.rel (%p851) target = $region44
        $region43: #{tpu_custom_call.1} parent=35 // pred_region
          %s854 = smul.u32 2, %s21
          %s856 = ssub.s32 128, 128
          %857 = vsyncadd %s847, %s856
          %s858 = smul.addr %s854, 64
          %s859 = scalar_lea.hbm %s4, %s858
          %s860 = sshll.u32 %s850, 4
          %s861 = int_to_ptr.vmem [resolvable:$true] %s860
          %866 = dma.vmem_to_hbm [thread:$0]  %s861, 128, %s859, %s847, 64, 64, 4
        $region44: #{tpu_custom_call.1} parent=35 // pred_fallthru
          _
      $region36: #{tpu_custom_call.1} parent=5 // pred_fallthru
        _
      %p867 = scmp.le.s32.totalorder 2, %s16
      // Predicated region
      $region45: #{tpu_custom_call.1} parent=5 // pred_check
        %p868 = pneg %p867
      $region46: #{tpu_custom_call.1} parent=5 // pred_check_branch
        %870 = sbr.rel (%p868) target = $region48
      $region47: #{tpu_custom_call.1} parent=5 // pred_region
        %s871 = ssub.s32 %s16, 2
        // Predicated region
        $region49: #{tpu_custom_call.1} parent=47 // pred_check
          %p872 = pneg %p144
        $region50: #{tpu_custom_call.1} parent=47 // pred_check_branch
          %874 = sbr.rel (%p872) target = $region52
        $region51: #{tpu_custom_call.1} parent=47 // pred_region
          %s875 = sand.u32 %s129, 1
          %s876 = scalar_lea.sflag [#allocation4], %s875
          %s877 = sand.u32 %s129, 1
          %s878 = smul.addr %s877, 8
          %s879 = scalar_lea.vmem [#allocation5], %s878
          %880 = dma.done %s876, 128
        $region52: #{tpu_custom_call.1} parent=47 // pred_fallthru
          _
      $region48: #{tpu_custom_call.1} parent=5 // pred_fallthru
        _
    $region6: #{tpu_custom_call.1} parent=1 // loop_footer
      %s20 = sadd.s32 1, %s16
    $region7: #{tpu_custom_call.1} parent=1 // loop_footer_branch
      %15 = sbr.rel target = $region3
    $region8: #{tpu_custom_call.1} parent=1 // loop_exit
      _
    %881 = vsyncpa [#allocation3], 1
    %s882 = scalar_lea.sflag [#allocation3], 1
    %883 = vsyncpa %s882, 1
    %884 = vsyncpa [#allocation4], 1
    %s885 = scalar_lea.sflag [#allocation4], 1
    %886 = vsyncpa %s885, 1

</llo_original>
